<compile_context>
chip_gen: v6e
topology: v6e:2x2x1
jax: 0.10.0
libtpu: 0.0.40
codegen_flags: <defaults>
</compile_context>

<pallas_src>
import numpy as np
import jax
import jax.numpy as jnp
from jax import lax
from jax.experimental import pallas as pl
from jax.experimental.pallas import tpu as pltpu

# ---------------------------------------------------------------------------
# db4 filter bank (exact pywt coefficients)
# ---------------------------------------------------------------------------
_DEC_LO = np.array([-0.010597401784997278, 0.032883011666982945,
                    0.030841381835986965, -0.18703481171888114,
                    -0.02798376941698385, 0.6308807679295904,
                    0.7148465705525415, 0.23037781330885523], dtype=np.float64)
_DEC_HI = np.array([-0.23037781330885523, 0.7148465705525415,
                    -0.6308807679295904, -0.02798376941698385,
                    0.18703481171888114, 0.030841381835986965,
                    -0.032883011666982945, -0.010597401784997278], dtype=np.float64)
_REC_LO = _DEC_LO[::-1].copy()   # synthesis lowpass
_REC_HI = _DEC_HI[::-1].copy()   # synthesis highpass
_L = _DEC_LO.shape[0]            # filter length = 8


def _dwt_coeff_len(n, filt_len=_L):
    # pywt.dwt_coeff_len for non-periodization modes
    return (n + filt_len - 1) // 2


def compute_modes(size, level):
    n = size
    for _ in range(level):
        n = _dwt_coeff_len(n)
    return n


# ---------------------------------------------------------------------------
# Wavelet filter banks (pytorch_wavelets afb1d / sfb1d, mode='symmetric')
# ---------------------------------------------------------------------------
def _afb1d(x):
    """One level of 1D analysis. x: (B, C, N) -> (lo, hi) each (B, C, outsize)."""
    B, C, N = x.shape
    outsize = _dwt_coeff_len(N)
    p = 2 * (outsize - 1) - N + _L
    xp = jnp.pad(x, ((0, 0), (0, 0), (p // 2, (p + 1) // 2)), mode='symmetric')
    xr = xp.reshape(B * C, 1, xp.shape[-1])
    # analysis = cross-correlation with reversed decomposition filters
    h0 = jnp.asarray(_DEC_LO[::-1], dtype=x.dtype)
    h1 = jnp.asarray(_DEC_HI[::-1], dtype=x.dtype)
    k = jnp.stack([h0, h1], axis=0)[:, None, :]  # (O=2, I=1, W=L)
    y = lax.conv_general_dilated(xr, k, window_strides=(2,), padding=[(0, 0)],
                                 dimension_numbers=('NCH', 'OIH', 'NCH'))
    y = y.reshape(B, C, 2, outsize)
    return y[:, :, 0, :], y[:, :, 1, :]


def _sfb1d(lo, hi):
    """One level of 1D synthesis (conv_transpose, stride 2, padding L-2)."""
    B, C, n = lo.shape
    z = jnp.stack([lo, hi], axis=2).reshape(B * C, 2, n)
    g0 = jnp.asarray(_REC_LO[::-1], dtype=lo.dtype)  # flip -> cross-correlation
    g1 = jnp.asarray(_REC_HI[::-1], dtype=lo.dtype)
    k = jnp.stack([g0, g1], axis=0)[None, :, :]      # (O=1, I=2, W=L)
    y = lax.conv_general_dilated(z, k, window_strides=(1,), padding=[(1, 1)],
                                 lhs_dilation=(2,),
                                 dimension_numbers=('NCH', 'OIH', 'NCH'))
    return y.reshape(B, C, 2 * n + 2 - _L)


# ---------------------------------------------------------------------------
# Pallas kernel: mul1d — out[b,o,m] = sum_i x[i,b,m] * w[i,o,m]
# (approx + detail streams share one lane-dense call; Ci contraction in-kernel)
# ---------------------------------------------------------------------------
def _mul1d_kernel(x_ref, w_ref, o_ref, acc_ref):
    # x_ref  : (Ci, tB, tM)  coefficients, contraction dim leading (cheap ref[i])
    # w_ref  : (Ci, Co, tM)  learned per-mode weights
    # o_ref  : (tB, Co, tM)  output coefficients (lane-dense last dim)
    # acc_ref: (tB, Co, tM)  f32 VMEM scratch accumulator
    ci = x_ref.shape[0]
    acc_ref[...] = jnp.zeros_like(acc_ref)

    def body(i, carry):
        xi = x_ref[i].astype(jnp.float32)            # (tB, tM)
        wi = w_ref[i].astype(jnp.float32)            # (Co, tM)
        acc_ref[...] += xi[:, None, :] * wi[None, :, :]
        return carry

    lax.fori_loop(0, ci, body, 0, unroll=min(ci, 4))
    o_ref[...] = acc_ref[...].astype(o_ref.dtype)


def _round_up(x, m):
    return ((x + m - 1) // m) * m


def mul1d_pallas(xa, xd, w1, w2):
    """einsum('bix,iox->box') applied to (xa, w1) and (xd, w2) in one Pallas call."""
    B, Ci, M = xa.shape
    Co = w1.shape[1]
    dtype = xa.dtype
    itemsize = jnp.dtype(dtype).itemsize

    # ---- layout plumbing: concat approx+detail, put contraction dim leading ----
    x_cat = jnp.concatenate([xa, xd], axis=-1)            # (B, Ci, 2M)
    w_cat = jnp.concatenate([w1, w2], axis=-1)            # (Ci, Co, 2M)
    x_t = jnp.transpose(x_cat, (1, 0, 2))                 # (Ci, B, 2M)

    # ---- tile selection --------------------------------------------------------
    # batch tile: whole batch unless it is large and 8-divisible
    tB = 8 if (B > 8 and B % 8 == 0) else B

    # lane tile: double-buffered inputs/outputs + f32 scratch within ~24 MiB
    # (safe against v7x's 64 MiB per-TC VMEM; v5e/v6e have more headroom).
    bytes_per_lane = 2 * itemsize * (Ci * tB + Ci * Co + tB * Co) + 4 * tB * Co
    budget = 24 * 1024 * 1024
    tM = max(128, (budget // bytes_per_lane) // 128 * 128)
    tM = min(tM, 2048)

    Mp = _round_up(2 * M, 128)        # lane-dense last dim (multiple of 128)
    tM = min(tM, Mp)
    Mp = _round_up(Mp, tM)

    pad = Mp - 2 * M
    x_p = jnp.pad(x_t, ((0, 0), (0, 0), (0, pad)))
    w_p = jnp.pad(w_cat, ((0, 0), (0, 0), (0, pad)))

    # grid: mode tiles outer, batch tiles inner -> weight tile stays resident
    grid = (Mp // tM, B // tB)

    vmem_limit = int(min(max(2 * bytes_per_lane * tM, 32 << 20), 48 << 20))

    out_p = pl.pallas_call(
        _mul1d_kernel,
        grid=grid,
        in_specs=[
            pl.BlockSpec((Ci, tB, tM), lambda m, b: (0, b, m)),
            pl.BlockSpec((Ci, Co, tM), lambda m, b: (0, 0, m)),   # invariant to b
        ],
        out_specs=pl.BlockSpec((tB, Co, tM), lambda m, b: (b, 0, m)),
        out_shape=jax.ShapeDtypeStruct((B, Co, Mp), dtype),
        scratch_shapes=[pltpu.VMEM((tB, Co, tM), jnp.float32)],
        compiler_params=pltpu.CompilerParams(
            dimension_semantics=("parallel", "parallel"),
            vmem_limit_bytes=vmem_limit,
        ),
        cost_estimate=pl.CostEstimate(
            flops=2 * B * Ci * Co * Mp,
            transcendentals=0,
            bytes_accessed=itemsize * Mp * (Ci * B + Ci * Co + B * Co),
        ),
    )(x_p, w_p)

    out = out_p[:, :, :2 * M]
    return out[..., :M], out[..., M:]


# ---------------------------------------------------------------------------
# WaveConv1d forward
# ---------------------------------------------------------------------------
def wave_conv1d_forward(x, weights1, weights2, level, size, *, use_pallas=True):
    N = x.shape[-1]
    if N > size:
        J = level + int(np.log2(N // size))
    elif N < size:
        J = level - int(np.log2(size // N))
    else:
        J = level

    # Multilevel DWT
    yl = x
    highs = []
    for _ in range(J):
        yl, yh = _afb1d(yl)
        highs.append(yh)

    # Learned channel mixing on approximation + coarsest detail coefficients
    if use_pallas:
        out_ft, out_last = mul1d_pallas(yl, highs[-1], weights1, weights2)
    else:
        out_ft = jnp.einsum('bix,iox->box', yl, weights1)
        out_last = jnp.einsum('bix,iox->box', highs[-1], weights2)

    cout = weights1.shape[1]
    out_coeffs = [jnp.zeros((x.shape[0], cout, h.shape[-1]), x.dtype) for h in highs]
    out_coeffs[-1] = out_last

    # Multilevel IDWT
    x0 = out_ft
    for x1 in out_coeffs[::-1]:
        if x0.shape[-1] > x1.shape[-1]:
            x0 = x0[..., :-1]
        x0 = _sfb1d(x0, x1)
    return x0


# ---------------------------------------------------------------------------
if __name__ == "__main__":
    B, Cin, Cout = 2, 4, 4
    size, level = 16, 2
    modes1 = compute_modes(size, level)   # length of approx coeffs (= 9 here)

    key = jax.random.PRNGKey(0)
    kx, k1, k2 = jax.random.split(key, 3)
    x = jax.random.normal(kx, (B, Cin, size), dtype=jnp.float32)
    scale = 1.0 / (Cin * Cout)
    weights1 = scale * jax.random.uniform(k1, (Cin, Cout, modes1), dtype=jnp.float32)
    weights2 = scale * jax.random.uniform(k2, (Cin, Cout, modes1), dtype=jnp.float32)

    out = wave_conv1d_forward(x, weights1, weights2, level, size, use_pallas=True)
    out = jax.block_until_ready(out)

    ref = wave_conv1d_forward(x, weights1, weights2, level, size, use_pallas=False)
    assert out.shape == (B, Cout, size), out.shape
    np.testing.assert_allclose(np.asarray(out), np.asarray(ref), rtol=1e-5, atol=1e-5)
    print("KERNEL_OK")
</pallas_src>

<mosaic_0001>
module attributes {stable_mosaic.version = 11 : i64} {
  func.func @_mul1d_kernel(%arg0: i32, %arg1: i32, %arg2: memref<4x2x128xf32, #tpu.memory_space<vmem>>, %arg3: memref<4x4x128xf32, #tpu.memory_space<vmem>>, %arg4: memref<2x4x128xf32, #tpu.memory_space<vmem>>, %arg5: memref<2x4x128xf32, #tpu.memory_space<vmem>>) attributes {dimension_semantics = [#tpu.dimension_semantics<parallel>, #tpu.dimension_semantics<parallel>], iteration_bounds = array<i64: 1, 1>, scalar_prefetch = 0 : i64, scratch_operands = 1 : i64, tpu.core_type = #tpu.core_type<tc>, window_params = [{transform_indices = @transform_0, window_bounds = array<i64: 4, 2, 128>}, {transform_indices = @transform_1, window_bounds = array<i64: 4, 4, 128>}, {transform_indices = @transform_2, window_bounds = array<i64: 2, 4, 128>}]} {
    %cst = arith.constant 0.000000e+00 : f32
    %0 = vector.broadcast %cst : f32 to vector<2x4x128xf32>
    %c0 = arith.constant 0 : index
    %c0_0 = arith.constant 0 : index
    %c0_1 = arith.constant 0 : index
    %1 = vector.load %arg5[%c0, %c0_0, %c0_1] : memref<2x4x128xf32, #tpu.memory_space<vmem>>, vector<2x4x128xf32>
    tpu.vector_store %arg5[%c0, %c0_0, %c0_1], %0 {strides = array<i32>} : memref<2x4x128xf32, #tpu.memory_space<vmem>>, vector<2x4x128xf32>,
    %c0_i32 = arith.constant 0 : i32
    %2 = arith.index_cast %c0_i32 : i32 to index
    %c0_2 = arith.constant 0 : index
    %c0_3 = arith.constant 0 : index
    %3 = vector.load %arg2[%2, %c0_2, %c0_3] : memref<4x2x128xf32, #tpu.memory_space<vmem>>, vector<1x2x128xf32>
    %4 = vector.shape_cast %3 : vector<1x2x128xf32> to vector<2x128xf32>
    %5 = arith.index_cast %c0_i32 : i32 to index
    %c0_4 = arith.constant 0 : index
    %c0_5 = arith.constant 0 : index
    %6 = vector.load %arg3[%5, %c0_4, %c0_5] : memref<4x4x128xf32, #tpu.memory_space<vmem>>, vector<1x4x128xf32>
    %7 = vector.shape_cast %6 : vector<1x4x128xf32> to vector<4x128xf32>
    %c0_6 = arith.constant 0 : index
    %c0_7 = arith.constant 0 : index
    %c0_8 = arith.constant 0 : index
    %8 = vector.load %arg5[%c0_6, %c0_7, %c0_8] : memref<2x4x128xf32, #tpu.memory_space<vmem>>, vector<2x4x128xf32>
    %9 = vector.shape_cast %4 : vector<2x128xf32> to vector<2x1x128xf32>
    %10 = vector.shape_cast %7 : vector<4x128xf32> to vector<1x4x128xf32>
    %11 = vector.broadcast %9 : vector<2x1x128xf32> to vector<2x4x128xf32>
    %12 = vector.broadcast %10 : vector<1x4x128xf32> to vector<2x4x128xf32>
    %13 = arith.mulf %11, %12 : vector<2x4x128xf32>
    %14 = arith.addf %8, %13 : vector<2x4x128xf32>
    %c0_9 = arith.constant 0 : index
    %c0_10 = arith.constant 0 : index
    %c0_11 = arith.constant 0 : index
    %15 = vector.load %arg5[%c0_9, %c0_10, %c0_11] : memref<2x4x128xf32, #tpu.memory_space<vmem>>, vector<2x4x128xf32>
    tpu.vector_store %arg5[%c0_9, %c0_10, %c0_11], %14 {strides = array<i32>} : memref<2x4x128xf32, #tpu.memory_space<vmem>>, vector<2x4x128xf32>,
    %c1_i32 = arith.constant 1 : i32
    %16 = arith.index_cast %c1_i32 : i32 to index
    %c0_12 = arith.constant 0 : index
    %c0_13 = arith.constant 0 : index
    %17 = vector.load %arg2[%16, %c0_12, %c0_13] : memref<4x2x128xf32, #tpu.memory_space<vmem>>, vector<1x2x128xf32>
    %18 = vector.shape_cast %17 : vector<1x2x128xf32> to vector<2x128xf32>
    %19 = arith.index_cast %c1_i32 : i32 to index
    %c0_14 = arith.constant 0 : index
    %c0_15 = arith.constant 0 : index
    %20 = vector.load %arg3[%19, %c0_14, %c0_15] : memref<4x4x128xf32, #tpu.memory_space<vmem>>, vector<1x4x128xf32>
    %21 = vector.shape_cast %20 : vector<1x4x128xf32> to vector<4x128xf32>
    %c0_16 = arith.constant 0 : index
    %c0_17 = arith.constant 0 : index
    %c0_18 = arith.constant 0 : index
    %22 = vector.load %arg5[%c0_16, %c0_17, %c0_18] : memref<2x4x128xf32, #tpu.memory_space<vmem>>, vector<2x4x128xf32>
    %23 = vector.shape_cast %18 : vector<2x128xf32> to vector<2x1x128xf32>
    %24 = vector.shape_cast %21 : vector<4x128xf32> to vector<1x4x128xf32>
    %25 = vector.broadcast %23 : vector<2x1x128xf32> to vector<2x4x128xf32>
    %26 = vector.broadcast %24 : vector<1x4x128xf32> to vector<2x4x128xf32>
    %27 = arith.mulf %25, %26 : vector<2x4x128xf32>
    %28 = arith.addf %22, %27 : vector<2x4x128xf32>
    %c0_19 = arith.constant 0 : index
    %c0_20 = arith.constant 0 : index
    %c0_21 = arith.constant 0 : index
    %29 = vector.load %arg5[%c0_19, %c0_20, %c0_21] : memref<2x4x128xf32, #tpu.memory_space<vmem>>, vector<2x4x128xf32>
    tpu.vector_store %arg5[%c0_19, %c0_20, %c0_21], %28 {strides = array<i32>} : memref<2x4x128xf32, #tpu.memory_space<vmem>>, vector<2x4x128xf32>,
    %c2_i32 = arith.constant 2 : i32
    %30 = arith.index_cast %c2_i32 : i32 to index
    %c0_22 = arith.constant 0 : index
    %c0_23 = arith.constant 0 : index
    %31 = vector.load %arg2[%30, %c0_22, %c0_23] : memref<4x2x128xf32, #tpu.memory_space<vmem>>, vector<1x2x128xf32>
    %32 = vector.shape_cast %31 : vector<1x2x128xf32> to vector<2x128xf32>
    %33 = arith.index_cast %c2_i32 : i32 to index
    %c0_24 = arith.constant 0 : index
    %c0_25 = arith.constant 0 : index
    %34 = vector.load %arg3[%33, %c0_24, %c0_25] : memref<4x4x128xf32, #tpu.memory_space<vmem>>, vector<1x4x128xf32>
    %35 = vector.shape_cast %34 : vector<1x4x128xf32> to vector<4x128xf32>
    %c0_26 = arith.constant 0 : index
    %c0_27 = arith.constant 0 : index
    %c0_28 = arith.constant 0 : index
    %36 = vector.load %arg5[%c0_26, %c0_27, %c0_28] : memref<2x4x128xf32, #tpu.memory_space<vmem>>, vector<2x4x128xf32>
    %37 = vector.shape_cast %32 : vector<2x128xf32> to vector<2x1x128xf32>
    %38 = vector.shape_cast %35 : vector<4x128xf32> to vector<1x4x128xf32>
    %39 = vector.broadcast %37 : vector<2x1x128xf32> to vector<2x4x128xf32>
    %40 = vector.broadcast %38 : vector<1x4x128xf32> to vector<2x4x128xf32>
    %41 = arith.mulf %39, %40 : vector<2x4x128xf32>
    %42 = arith.addf %36, %41 : vector<2x4x128xf32>
    %c0_29 = arith.constant 0 : index
    %c0_30 = arith.constant 0 : index
    %c0_31 = arith.constant 0 : index
    %43 = vector.load %arg5[%c0_29, %c0_30, %c0_31] : memref<2x4x128xf32, #tpu.memory_space<vmem>>, vector<2x4x128xf32>
    tpu.vector_store %arg5[%c0_29, %c0_30, %c0_31], %42 {strides = array<i32>} : memref<2x4x128xf32, #tpu.memory_space<vmem>>, vector<2x4x128xf32>,
    %c3_i32 = arith.constant 3 : i32
    %44 = arith.index_cast %c3_i32 : i32 to index
    %c0_32 = arith.constant 0 : index
    %c0_33 = arith.constant 0 : index
    %45 = vector.load %arg2[%44, %c0_32, %c0_33] : memref<4x2x128xf32, #tpu.memory_space<vmem>>, vector<1x2x128xf32>
    %46 = vector.shape_cast %45 : vector<1x2x128xf32> to vector<2x128xf32>
    %47 = arith.index_cast %c3_i32 : i32 to index
    %c0_34 = arith.constant 0 : index
    %c0_35 = arith.constant 0 : index
    %48 = vector.load %arg3[%47, %c0_34, %c0_35] : memref<4x4x128xf32, #tpu.memory_space<vmem>>, vector<1x4x128xf32>
    %49 = vector.shape_cast %48 : vector<1x4x128xf32> to vector<4x128xf32>
    %c0_36 = arith.constant 0 : index
    %c0_37 = arith.constant 0 : index
    %c0_38 = arith.constant 0 : index
    %50 = vector.load %arg5[%c0_36, %c0_37, %c0_38] : memref<2x4x128xf32, #tpu.memory_space<vmem>>, vector<2x4x128xf32>
    %51 = vector.shape_cast %46 : vector<2x128xf32> to vector<2x1x128xf32>
    %52 = vector.shape_cast %49 : vector<4x128xf32> to vector<1x4x128xf32>
    %53 = vector.broadcast %51 : vector<2x1x128xf32> to vector<2x4x128xf32>
    %54 = vector.broadcast %52 : vector<1x4x128xf32> to vector<2x4x128xf32>
    %55 = arith.mulf %53, %54 : vector<2x4x128xf32>
    %56 = arith.addf %50, %55 : vector<2x4x128xf32>
    %c0_39 = arith.constant 0 : index
    %c0_40 = arith.constant 0 : index
    %c0_41 = arith.constant 0 : index
    %57 = vector.load %arg5[%c0_39, %c0_40, %c0_41] : memref<2x4x128xf32, #tpu.memory_space<vmem>>, vector<2x4x128xf32>
    tpu.vector_store %arg5[%c0_39, %c0_40, %c0_41], %56 {strides = array<i32>} : memref<2x4x128xf32, #tpu.memory_space<vmem>>, vector<2x4x128xf32>,
    %c4_i32 = arith.constant 4 : i32
    %c0_42 = arith.constant 0 : index
    %c0_43 = arith.constant 0 : index
    %c0_44 = arith.constant 0 : index
    %58 = vector.load %arg5[%c0_42, %c0_43, %c0_44] : memref<2x4x128xf32, #tpu.memory_space<vmem>>, vector<2x4x128xf32>
    %c0_45 = arith.constant 0 : index
    %c0_46 = arith.constant 0 : index
    %c0_47 = arith.constant 0 : index
    %59 = vector.load %arg4[%c0_45, %c0_46, %c0_47] : memref<2x4x128xf32, #tpu.memory_space<vmem>>, vector<2x4x128xf32>
    tpu.vector_store %arg4[%c0_45, %c0_46, %c0_47], %58 {strides = array<i32>} : memref<2x4x128xf32, #tpu.memory_space<vmem>>, vector<2x4x128xf32>,
    return
  }
  func.func @transform_0(%arg0: i32, %arg1: i32) -> (i32, i32, i32) {
    %c0_i32 = arith.constant 0 : i32
    %c0_i32_0 = arith.constant 0 : i32
    return %c0_i32, %arg1, %arg0 : i32, i32, i32
  }
  func.func @transform_1(%arg0: i32, %arg1: i32) -> (i32, i32, i32) {
    %c0_i32 = arith.constant 0 : i32
    %c0_i32_0 = arith.constant 0 : i32
    %c0_i32_1 = arith.constant 0 : i32
    return %c0_i32, %c0_i32_0, %arg0 : i32, i32, i32
  }
  func.func @transform_2(%arg0: i32, %arg1: i32) -> (i32, i32, i32) {
    %c0_i32 = arith.constant 0 : i32
    %c0_i32_0 = arith.constant 0 : i32
    return %arg1, %c0_i32, %arg0 : i32, i32, i32
  }
}

</mosaic_0001>

<llo_original>
// kernel: tpu_custom_call.1
$region0: #{tpu_custom_call.1}
  #allocation0 [shape = 'u32[]', space=smem, size = 0x4, offset = 0x4, fixed_abs, tag = 'smem constant byte address 0x4 - core index']
  #allocation1 [shape = 'u32[144,128]{1,0:T(1,128)}', space=vmem, size = 0x12000, scoped, tag = 'internal scratch']
  #allocation2 [shape = 'f32[2,4,128]{2,1,0:T(4,128)}', space=vmem, size = 0x1000, scoped, tag = 'scratch operand']
  %s0 = inlined_call_operand.hbm [shape: f32[4,2,128], index: 0, kind: input, shape index: {}]
  %s1 = inlined_call_operand.hbm [shape: f32[4,4,128], index: 1, kind: input, shape index: {}]
  %s2 = inlined_call_operand.hbm [shape: f32[2,4,128], index: 2, kind: output, shape index: {}]
  %s3 = sld [smem:[#allocation0]]
  $region26: #{tpu_custom_call.1} parent=0
    _
  %s5 = ssub.s32 1, %s3
  %s6 = scalar_select 0, %s5, %s3
  $region1: #{tpu_custom_call.1} parent=0
    #allocation3 [shape = 'u8[4096]{0}', space=vmem, size = 0x1000, scoped, tag = 'input window, operand 0, single buffered']
    #allocation4 [shape = 's32[1]{0}', space=sflag, size = 0x4, scoped, tag = 'scoped memory for tpu_custom_call.1']
    #allocation5 [shape = 's32[1]{0}', space=sflag, size = 0x4, scoped, tag = 'scoped memory for tpu_custom_call.1']
    #allocation6 [shape = 'u8[8192]{0}', space=vmem, size = 0x2000, scoped, tag = 'input window, operand 1, single buffered']
    #allocation7 [shape = 's32[1]{0}', space=sflag, size = 0x4, scoped, tag = 'scoped memory for tpu_custom_call.1']
    #allocation8 [shape = 'u8[4096]{0}', space=vmem, size = 0x1000, scoped, tag = 'output window, operand 0, single buffered']
    %7 = vsyncpa [#allocation4], 0
    %8 = vsyncpa [#allocation7], 0
    %9 = vsyncpa [#allocation5], 0
    // Predicated region
    $region2: #{tpu_custom_call.1} parent=1 // pred_check
      _
    $region3: #{tpu_custom_call.1} parent=1 // pred_check_branch
      %11 = sbr.rel (0) target = $region5
    $region4: #{tpu_custom_call.1} parent=1 // pred_region
      %s13 = ssub.s32 128, 128
      %14 = vsyncadd [#allocation4], %s13
      %s15 = sshll.u32 [#allocation3], 4
      %s16 = int_to_ptr.vmem [resolvable:$true] %s15
      %21 = dma.hbm_to_vmem [thread:$0]  %s0, 128, %s16, [#allocation4], 32, 32, 2
    $region5: #{tpu_custom_call.1} parent=1 // pred_fallthru
      _
    // Predicated region
    $region6: #{tpu_custom_call.1} parent=1 // pred_check
      _
    $region7: #{tpu_custom_call.1} parent=1 // pred_check_branch
      %23 = sbr.rel (0) target = $region9
    $region8: #{tpu_custom_call.1} parent=1 // pred_region
      %s25 = ssub.s32 256, 256
      %26 = vsyncadd [#allocation7], %s25
      %s27 = sshll.u32 [#allocation6], 4
      %s28 = int_to_ptr.vmem [resolvable:$true] %s27
      %33 = dma.hbm_to_vmem [thread:$0]  %s1, 256, %s28, [#allocation7], 64, 64, 4
    $region9: #{tpu_custom_call.1} parent=1 // pred_fallthru
      _
    // Predicated region
    $region10: #{tpu_custom_call.1} parent=1 // pred_check
      _
    $region11: #{tpu_custom_call.1} parent=1 // pred_check_branch
      %35 = sbr.rel (0) target = $region13
    $region12: #{tpu_custom_call.1} parent=1 // pred_region
      %36 = dma.done [#allocation4], 128
    $region13: #{tpu_custom_call.1} parent=1 // pred_fallthru
      _
    // Predicated region
    $region14: #{tpu_custom_call.1} parent=1 // pred_check
      _
    $region15: #{tpu_custom_call.1} parent=1 // pred_check_branch
      %38 = sbr.rel (0) target = $region17
    $region16: #{tpu_custom_call.1} parent=1 // pred_region
      %39 = dma.done [#allocation7], 256
    $region17: #{tpu_custom_call.1} parent=1 // pred_fallthru
      _
    %40 = vst [vmem:[#allocation2] sm:$0xf] 0.0
    %41 = vst [vmem:[#allocation2 + $0x4] sm:$0xf] 0.0
    %v42 = vld [vmem:[#allocation3] sm:$0x3]
    %v43 = vld [vmem:[#allocation6] sm:$0xf]
    %v44 = vld [vmem:[#allocation2] sm:$0xf]
    %v45 = vld [vmem:[#allocation2 + $0x4] sm:$0xf]
    %v48 = vunpack.c.l.s4 1966171168
    %v49 = vunpack.c.0.s8 %v48
    %v50 = vlaneseq
    %v51 = vshrl.u32 %v50, 7
    %v52 = vsub.s32 %v49, %v51
    %v53 = vrot.slane %v42, %v52
    %v54 = vcombine.high %v53, %v53
    %v56 = vunpack.c.l.s4 1966171168
    %v57 = vunpack.c.0.s8 %v56
    %v58 = vlaneseq
    %v59 = vshrl.u32 %v58, 7
    %v60 = vsub.s32 %v57, %v59
    %v61 = vrot.slane %v53, %v60
    %v63 = vunpack.c.l.s4 1966171168
    %v64 = vunpack.c.0.s8 %v63
    %v65 = vlaneseq
    %v66 = vshrl.u32 %v65, 7
    %v67 = vsub.s32 %v64, %v66
    %v68 = vrot.slane %v54, %v67
    %v69 = vlaneseq
    %v70 = vshrl.u32 %v69, 7
    %v71 = vsub.s32 0, %v70
    %v72 = vrot.slane %v61, %v71
    %v73 = vlaneseq
    %v74 = vshrl.u32 %v73, 7
    %v75 = vsub.s32 0, %v74
    %v76 = vrot.slane %v68, %v75
    %v79 = vmul.f32 %v72, %v43
    %v80 = vmul.f32 %v76, %v43
    %v81 = vadd.f32 %v44, %v79
    %v82 = vadd.f32 %v45, %v80
    %83 = vst [vmem:[#allocation2] sm:$0xf] %v81
    %84 = vst [vmem:[#allocation2 + $0x4] sm:$0xf] %v82
    %s85 = scalar_lea.vmem [#allocation3], 2
    %v86 = vld [vmem:[%s85] sm:$0x3]
    %s87 = scalar_lea.vmem [#allocation6], 4
    %v88 = vld [vmem:[%s87] sm:$0xf]
    %v89 = vld [vmem:[#allocation2] sm:$0xf]
    %v90 = vld [vmem:[#allocation2 + $0x4] sm:$0xf]
    %v93 = vunpack.c.l.s4 1966171168
    %v94 = vunpack.c.0.s8 %v93
    %v95 = vlaneseq
    %v96 = vshrl.u32 %v95, 7
    %v97 = vsub.s32 %v94, %v96
    %v98 = vrot.slane %v86, %v97
    %v99 = vcombine.high %v98, %v98
    %v101 = vunpack.c.l.s4 1966171168
    %v102 = vunpack.c.0.s8 %v101
    %v103 = vlaneseq
    %v104 = vshrl.u32 %v103, 7
    %v105 = vsub.s32 %v102, %v104
    %v106 = vrot.slane %v98, %v105
    %v108 = vunpack.c.l.s4 1966171168
    %v109 = vunpack.c.0.s8 %v108
    %v110 = vlaneseq
    %v111 = vshrl.u32 %v110, 7
    %v112 = vsub.s32 %v109, %v111
    %v113 = vrot.slane %v99, %v112
    %v114 = vlaneseq
    %v115 = vshrl.u32 %v114, 7
    %v116 = vsub.s32 0, %v115
    %v117 = vrot.slane %v106, %v116
    %v118 = vlaneseq
    %v119 = vshrl.u32 %v118, 7
    %v120 = vsub.s32 0, %v119
    %v121 = vrot.slane %v113, %v120
    %v124 = vmul.f32 %v117, %v88
    %v125 = vmul.f32 %v121, %v88
    %v126 = vadd.f32 %v89, %v124
    %v127 = vadd.f32 %v90, %v125
    %128 = vst [vmem:[#allocation2] sm:$0xf] %v126
    %129 = vst [vmem:[#allocation2 + $0x4] sm:$0xf] %v127
    %s130 = scalar_lea.vmem [#allocation3], 4
    %v131 = vld [vmem:[%s130] sm:$0x3]
    %s132 = scalar_lea.vmem [#allocation6], 8
    %v133 = vld [vmem:[%s132] sm:$0xf]
    %v134 = vld [vmem:[#allocation2] sm:$0xf]
    %v135 = vld [vmem:[#allocation2 + $0x4] sm:$0xf]
    %v138 = vunpack.c.l.s4 1966171168
    %v139 = vunpack.c.0.s8 %v138
    %v140 = vlaneseq
    %v141 = vshrl.u32 %v140, 7
    %v142 = vsub.s32 %v139, %v141
    %v143 = vrot.slane %v131, %v142
    %v144 = vcombine.high %v143, %v143
    %v146 = vunpack.c.l.s4 1966171168
    %v147 = vunpack.c.0.s8 %v146
    %v148 = vlaneseq
    %v149 = vshrl.u32 %v148, 7
    %v150 = vsub.s32 %v147, %v149
    %v151 = vrot.slane %v143, %v150
    %v153 = vunpack.c.l.s4 1966171168
    %v154 = vunpack.c.0.s8 %v153
    %v155 = vlaneseq
    %v156 = vshrl.u32 %v155, 7
    %v157 = vsub.s32 %v154, %v156
    %v158 = vrot.slane %v144, %v157
    %v159 = vlaneseq
    %v160 = vshrl.u32 %v159, 7
    %v161 = vsub.s32 0, %v160
    %v162 = vrot.slane %v151, %v161
    %v163 = vlaneseq
    %v164 = vshrl.u32 %v163, 7
    %v165 = vsub.s32 0, %v164
    %v166 = vrot.slane %v158, %v165
    %v169 = vmul.f32 %v162, %v133
    %v170 = vmul.f32 %v166, %v133
    %v171 = vadd.f32 %v134, %v169
    %v172 = vadd.f32 %v135, %v170
    %173 = vst [vmem:[#allocation2] sm:$0xf] %v171
    %174 = vst [vmem:[#allocation2 + $0x4] sm:$0xf] %v172
    %s175 = scalar_lea.vmem [#allocation3], 6
    %v176 = vld [vmem:[%s175] sm:$0x3]
    %s177 = scalar_lea.vmem [#allocation6], 12
    %v178 = vld [vmem:[%s177] sm:$0xf]
    %v179 = vld [vmem:[#allocation2] sm:$0xf]
    %v180 = vld [vmem:[#allocation2 + $0x4] sm:$0xf]
    %v183 = vunpack.c.l.s4 1966171168
    %v184 = vunpack.c.0.s8 %v183
    %v185 = vlaneseq
    %v186 = vshrl.u32 %v185, 7
    %v187 = vsub.s32 %v184, %v186
    %v188 = vrot.slane %v176, %v187
    %v189 = vcombine.high %v188, %v188
    %v191 = vunpack.c.l.s4 1966171168
    %v192 = vunpack.c.0.s8 %v191
    %v193 = vlaneseq
    %v194 = vshrl.u32 %v193, 7
    %v195 = vsub.s32 %v192, %v194
    %v196 = vrot.slane %v188, %v195
    %v198 = vunpack.c.l.s4 1966171168
    %v199 = vunpack.c.0.s8 %v198
    %v200 = vlaneseq
    %v201 = vshrl.u32 %v200, 7
    %v202 = vsub.s32 %v199, %v201
    %v203 = vrot.slane %v189, %v202
    %v204 = vlaneseq
    %v205 = vshrl.u32 %v204, 7
    %v206 = vsub.s32 0, %v205
    %v207 = vrot.slane %v196, %v206
    %v208 = vlaneseq
    %v209 = vshrl.u32 %v208, 7
    %v210 = vsub.s32 0, %v209
    %v211 = vrot.slane %v203, %v210
    %v214 = vmul.f32 %v207, %v178
    %v215 = vmul.f32 %v211, %v178
    %v216 = vadd.f32 %v179, %v214
    %v217 = vadd.f32 %v180, %v215
    %218 = vst [vmem:[#allocation2] sm:$0xf] %v216
    %219 = vst [vmem:[#allocation2 + $0x4] sm:$0xf] %v217
    %v220 = vld [vmem:[#allocation2] sm:$0xf]
    %v221 = vld [vmem:[#allocation2 + $0x4] sm:$0xf]
    %222 = vst [vmem:[#allocation8] sm:$0xf] %v220
    %223 = vst [vmem:[#allocation8 + $0x4] sm:$0xf] %v221
    // Predicated region
    $region18: #{tpu_custom_call.1} parent=1 // pred_check
      _
    $region19: #{tpu_custom_call.1} parent=1 // pred_check_branch
      %225 = sbr.rel (0) target = $region21
    $region20: #{tpu_custom_call.1} parent=1 // pred_region
      %s227 = ssub.s32 128, 128
      %228 = vsyncadd [#allocation5], %s227
      %s229 = sshll.u32 [#allocation8], 4
      %s230 = int_to_ptr.vmem [resolvable:$true] %s229
      %235 = dma.vmem_to_hbm [thread:$0]  %s230, 128, %s2, [#allocation5], 64, 64, 4
    $region21: #{tpu_custom_call.1} parent=1 // pred_fallthru
      _
    // Predicated region
    $region22: #{tpu_custom_call.1} parent=1 // pred_check
      _
    $region23: #{tpu_custom_call.1} parent=1 // pred_check_branch
      %237 = sbr.rel (0) target = $region25
    $region24: #{tpu_custom_call.1} parent=1 // pred_region
      %238 = dma.done [#allocation5], 128
    $region25: #{tpu_custom_call.1} parent=1 // pred_fallthru
      _
    %239 = vsyncpa [#allocation4], 1
    %240 = vsyncpa [#allocation7], 1
    %241 = vsyncpa [#allocation5], 1

</llo_original>
